<compile_context>
chip_gen: v7x
topology: tpu7x:2x2x1
jax: 0.10.0
libtpu: 0.0.40
codegen_flags: <defaults>
</compile_context>

<pallas_src>
import jax
import jax.numpy as jnp
from jax.experimental import pallas as pl
from jax.experimental.pallas import tpu as pltpu

LANE = 128
NEG_INF = -1e30


def _round_up(x, m):
    return (x + m - 1) // m * m


def _cdiv(a, b):
    return (a + b - 1) // b


# ----------------------------- Pallas kernel ------------------------------ #
def fused_head_kernel(img_ref, txt_ref, w_img_ref, w_txt_ref, b_ref, out_ref):
    """softmax( [img | txt] @ W + b ) over a (tm, 128)-lane-padded label axis."""
    # Explicit accumulation: on v7x the second matmul can accumulate in the
    # MRB instead of popping two f32 results and adding on the VPU.
    acc = jnp.dot(img_ref[...], w_img_ref[...], preferred_element_type=jnp.float32)
    acc = acc + jnp.dot(txt_ref[...], w_txt_ref[...], preferred_element_type=jnp.float32)
    logits = acc + b_ref[...]                  # (1, L_pad) f32 broadcast over rows

    # Padded label columns carry bias = -1e30 -> exp underflows to 0, so they
    # contribute nothing to the denominator and produce exactly 0 output.
    m = jnp.max(logits, axis=-1, keepdims=True)
    e = jnp.exp(logits - m)
    denom = jnp.sum(e, axis=-1, keepdims=True)
    out_ref[...] = (e / denom).astype(out_ref.dtype)   # exact normalisation (mem-bound; free)


def fused_classifier_head(image_emb, text_emb, w_img_p, w_txt_p, b_p,
                          num_labels, *, max_tile=1024):
    """image_emb, text_emb: [B, D] (bf16 or f32).
    w_img_p / w_txt_p: [D, L_pad] bf16 (label axis pre-padded to 128 lanes).
    b_p: [1, L_pad] f32 with -1e30 in the padded columns.
    Returns softmax probabilities [B, num_labels] f32."""
    B, D = image_emb.shape
    L_pad = w_img_p.shape[1]

    # Cast first (no-op if the backbones already emit bf16), then pad the batch
    # only up to a multiple of 16 rows (bf16 sublane packing) -- NOT to a full
    # tile, so no dead rows are DMA'd or matmul'd.
    img = image_emb.astype(jnp.bfloat16)
    txt = text_emb.astype(jnp.bfloat16)
    B_pad = _round_up(max(B, 16), 16)
    if B_pad != B:
        img = jnp.pad(img, ((0, B_pad - B), (0, 0)))
        txt = jnp.pad(txt, ((0, B_pad - B), (0, 0)))

    # Tile size: biggest comfortable tile (tm=1024 -> ~7 MiB double-buffered,
    # far under the default scoped VMEM of v5e/v6e/v7x), but split into at
    # least 2 grid steps once B_pad >= 32 so both v7x TensorCores get work.
    if B_pad >= 32:
        tm = min(max_tile, _round_up(_cdiv(B_pad, 2), 16))
    else:
        tm = B_pad
    grid = (_cdiv(B_pad, tm),)                 # ragged last tile is fine

    out = pl.pallas_call(
        fused_head_kernel,
        out_shape=jax.ShapeDtypeStruct((B_pad, L_pad), jnp.bfloat16),
        grid=grid,
        in_specs=[
            pl.BlockSpec((tm, D), lambda i: (i, 0)),      # image_emb tile
            pl.BlockSpec((tm, D), lambda i: (i, 0)),      # text_emb  tile
            pl.BlockSpec((D, L_pad), lambda i: (0, 0)),   # w_img (resident)
            pl.BlockSpec((D, L_pad), lambda i: (0, 0)),   # w_txt (resident)
            pl.BlockSpec((1, L_pad), lambda i: (0, 0)),   # bias  (resident)
        ],
        out_specs=pl.BlockSpec((tm, L_pad), lambda i: (i, 0)),
        compiler_params=pltpu.CompilerParams(
            dimension_semantics=("parallel",),            # shard batch tiles
        ),
    )(img, txt, w_img_p, w_txt_p, b_p)

    return out[:B, :num_labels].astype(jnp.float32)


# ----------------------- model (params + glue in JAX) --------------------- #
class CustoMultiModalImageTextClassification:
    def __init__(self, key, num_labels=6):
        self.hidden_size = 768
        self.num_labels = num_labels
        self.image_embed_dim = 768
        self.text_embed_dim = 768

        k1, k2, k3, k4 = jax.random.split(key, 4)
        in_dim = self.text_embed_dim + self.image_embed_dim  # 1536
        d = self.image_embed_dim

        # torch.nn.Linear(1536, num_labels): weight [L, 1536], bias [L].
        # Stored transposed ([1536, L]) so the kernel does x @ W.
        bound = 1.0 / jnp.sqrt(in_dim)
        w = jax.random.uniform(k1, (in_dim, num_labels), jnp.float32, -bound, bound)
        b = jax.random.uniform(k2, (num_labels,), jnp.float32, -bound, bound)

        # Pre-split / pre-pad once (lane-dense 128-wide label axis):
        #   padded weight columns = 0, padded bias columns = -1e30 so the
        #   in-kernel softmax drives them to exactly 0.
        l_pad = _round_up(max(num_labels, LANE), LANE)
        w_pad = jnp.zeros((in_dim, l_pad), jnp.float32).at[:, :num_labels].set(w)
        self.w_img = w_pad[:d, :].astype(jnp.bfloat16)   # [768, 128]
        self.w_txt = w_pad[d:, :].astype(jnp.bfloat16)   # [768, 128]
        self.bias = (
            jnp.full((1, l_pad), NEG_INF, jnp.float32).at[0, :num_labels].set(b)
        )

        # TODO(synk): image_model / text_model are external pretrained backbones
        # (passed as None in the reference __init__); replaced with small
        # deterministic plain-JAX stand-ins producing [B, 768] bf16 embeddings.
        # If they were Pallas-expressible, their final pooling/projection could
        # be fused into the head kernel to kill the [B,768] HBM round-trip
        # (the dominant cost at small batch).
        self._img_proj = jax.random.normal(k3, (3, d), jnp.float32) * 0.02
        self._tok_emb = jax.random.normal(k4, (32, d), jnp.float32) * 0.02

    # --- backbone stand-ins (plain-JAX glue, not part of the Pallas hot path) ---
    def image_model(self, pixel_values):                        # NCHW -> [B, 768] bf16
        pooled = jnp.mean(pixel_values, axis=(2, 3))            # [B, C]
        return (pooled @ self._img_proj).astype(jnp.bfloat16)   # [B, 768]

    def text_model(self, input_ids, attention_mask):            # -> [B, 768] bf16
        emb = self._tok_emb[input_ids]                          # [B, S, 768]
        mask = attention_mask[..., None].astype(jnp.float32)    # [B, S, 1]
        pooled = jnp.sum(emb * mask, axis=1) / jnp.maximum(jnp.sum(mask, axis=1), 1.0)
        return pooled.astype(jnp.bfloat16)

    # --- forward: cat + linear + softmax fused in the Pallas kernel ---
    def __call__(self, pixel_values, input_ids, attention_mask):
        image_output = self.image_model(pixel_values)                 # [B, 768] bf16
        text_output = self.text_model(input_ids, attention_mask)      # [B, 768] bf16
        return fused_classifier_head(
            image_output, text_output,
            self.w_img, self.w_txt, self.bias, self.num_labels,
        )


# ---------------------------------- main ---------------------------------- #
if __name__ == "__main__":
    key = jax.random.PRNGKey(0)
    k_model, k_pix, k_ids = jax.random.split(key, 3)

    model = CustoMultiModalImageTextClassification(k_model, num_labels=6)

    B, C, H, W, S = 2, 3, 16, 16, 8
    pixel_values = jax.random.normal(k_pix, (B, C, H, W), jnp.float32)     # NCHW
    input_ids = jax.random.randint(k_ids, (B, S), 0, 32, jnp.int32)
    attention_mask = jnp.ones((B, S), jnp.int32)

    out = model(pixel_values, input_ids, attention_mask)
    out = jax.block_until_ready(out)

    assert out.shape == (B, 6)
    # softmax rows must sum to ~1 (bf16 output precision)
    assert jnp.allclose(jnp.sum(out, axis=1), 1.0, atol=1e-2)
    assert jnp.all(out >= 0.0)

    print("KERNEL_OK")
</pallas_src>

<mosaic_0001>
module attributes {stable_mosaic.version = 11 : i64} {
  func.func @fused_head_kernel(%arg0: i32, %arg1: memref<16x768xbf16, #tpu.memory_space<vmem>>, %arg2: memref<16x768xbf16, #tpu.memory_space<vmem>>, %arg3: memref<768x128xbf16, #tpu.memory_space<vmem>>, %arg4: memref<768x128xbf16, #tpu.memory_space<vmem>>, %arg5: memref<1x128xf32, #tpu.memory_space<vmem>>, %arg6: memref<16x128xbf16, #tpu.memory_space<vmem>>) attributes {dimension_semantics = [#tpu.dimension_semantics<parallel>], iteration_bounds = array<i64: 1>, scalar_prefetch = 0 : i64, scratch_operands = 0 : i64, tpu.core_type = #tpu.core_type<tc>, window_params = [{transform_indices = @transform_0, window_bounds = array<i64: 16, 768>}, {transform_indices = @transform_1, window_bounds = array<i64: 16, 768>}, {pipeline_mode = #tpu.pipeline_mode<synchronous>, transform_indices = @transform_2, window_bounds = array<i64: 768, 128>}, {pipeline_mode = #tpu.pipeline_mode<synchronous>, transform_indices = @transform_3, window_bounds = array<i64: 768, 128>}, {pipeline_mode = #tpu.pipeline_mode<synchronous>, transform_indices = @transform_4, window_bounds = array<i64: 1, 128>}, {transform_indices = @transform_5, window_bounds = array<i64: 16, 128>}]} {
    %c0 = arith.constant 0 : index
    %c0_0 = arith.constant 0 : index
    %0 = vector.load %arg1[%c0, %c0_0] : memref<16x768xbf16, #tpu.memory_space<vmem>>, vector<16x768xbf16>
    %c0_1 = arith.constant 0 : index
    %c0_2 = arith.constant 0 : index
    %1 = vector.load %arg3[%c0_1, %c0_2] : memref<768x128xbf16, #tpu.memory_space<vmem>>, vector<768x128xbf16>
    %cst = arith.constant dense<0.000000e+00> : vector<16x128xf32>
    %2 = tpu.matmul %0, %1, %cst {dimension_numbers = #tpu.dot_dimension_numbers<[1], [0], [0], [1], [0, 0, 1, 1], [], []>} : vector<16x768xbf16>, vector<768x128xbf16>, vector<16x128xf32> -> vector<16x128xf32>
    %c0_3 = arith.constant 0 : index
    %c0_4 = arith.constant 0 : index
    %3 = vector.load %arg2[%c0_3, %c0_4] : memref<16x768xbf16, #tpu.memory_space<vmem>>, vector<16x768xbf16>
    %c0_5 = arith.constant 0 : index
    %c0_6 = arith.constant 0 : index
    %4 = vector.load %arg4[%c0_5, %c0_6] : memref<768x128xbf16, #tpu.memory_space<vmem>>, vector<768x128xbf16>
    %cst_7 = arith.constant dense<0.000000e+00> : vector<16x128xf32>
    %5 = tpu.matmul %3, %4, %cst_7 {dimension_numbers = #tpu.dot_dimension_numbers<[1], [0], [0], [1], [0, 0, 1, 1], [], []>} : vector<16x768xbf16>, vector<768x128xbf16>, vector<16x128xf32> -> vector<16x128xf32>
    %6 = arith.addf %2, %5 : vector<16x128xf32>
    %c0_8 = arith.constant 0 : index
    %c0_9 = arith.constant 0 : index
    %7 = vector.load %arg5[%c0_8, %c0_9] : memref<1x128xf32, #tpu.memory_space<vmem>>, vector<1x128xf32>
    %8 = vector.broadcast %7 : vector<1x128xf32> to vector<16x128xf32>
    %9 = arith.addf %6, %8 : vector<16x128xf32>
    %cst_10 = arith.constant dense<0xFF800000> : vector<16xf32>
    %10 = vector.multi_reduction <maximumf>, %9, %cst_10 [1] : vector<16x128xf32> to vector<16xf32>
    %11 = vector.shape_cast %10 : vector<16xf32> to vector<16x1xf32>
    %12 = vector.broadcast %11 : vector<16x1xf32> to vector<16x128xf32>
    %13 = arith.subf %9, %12 : vector<16x128xf32>
    %14 = math.exp %13 : vector<16x128xf32>
    %cst_11 = arith.constant dense<0.000000e+00> : vector<16xf32>
    %15 = vector.multi_reduction <add>, %14, %cst_11 [1] : vector<16x128xf32> to vector<16xf32>
    %16 = vector.shape_cast %15 : vector<16xf32> to vector<16x1xf32>
    %17 = vector.broadcast %16 : vector<16x1xf32> to vector<16x128xf32>
    %18 = arith.divf %14, %17 : vector<16x128xf32>
    %19 = arith.truncf %18 : vector<16x128xf32> to vector<16x128xbf16>
    %c0_12 = arith.constant 0 : index
    %c0_13 = arith.constant 0 : index
    %20 = vector.load %arg6[%c0_12, %c0_13] : memref<16x128xbf16, #tpu.memory_space<vmem>>, vector<16x128xbf16>
    tpu.vector_store %arg6[%c0_12, %c0_13], %19 {strides = array<i32>} : memref<16x128xbf16, #tpu.memory_space<vmem>>, vector<16x128xbf16>,
    return
  }
  func.func @transform_0(%arg0: i32) -> (i32, i32) {
    %c0_i32 = arith.constant 0 : i32
    %c0_i32_0 = arith.constant 0 : i32
    return %arg0, %c0_i32 : i32, i32
  }
  func.func @transform_1(%arg0: i32) -> (i32, i32) {
    %c0_i32 = arith.constant 0 : i32
    %c0_i32_0 = arith.constant 0 : i32
    return %arg0, %c0_i32 : i32, i32
  }
  func.func @transform_2(%arg0: i32) -> (i32, i32) {
    %c0_i32 = arith.constant 0 : i32
    %c0_i32_0 = arith.constant 0 : i32
    %c0_i32_1 = arith.constant 0 : i32
    return %c0_i32, %c0_i32_0 : i32, i32
  }
  func.func @transform_3(%arg0: i32) -> (i32, i32) {
    %c0_i32 = arith.constant 0 : i32
    %c0_i32_0 = arith.constant 0 : i32
    %c0_i32_1 = arith.constant 0 : i32
    return %c0_i32, %c0_i32_0 : i32, i32
  }
  func.func @transform_4(%arg0: i32) -> (i32, i32) {
    %c0_i32 = arith.constant 0 : i32
    %c0_i32_0 = arith.constant 0 : i32
    %c0_i32_1 = arith.constant 0 : i32
    return %c0_i32, %c0_i32_0 : i32, i32
  }
  func.func @transform_5(%arg0: i32) -> (i32, i32) {
    %c0_i32 = arith.constant 0 : i32
    %c0_i32_0 = arith.constant 0 : i32
    return %arg0, %c0_i32 : i32, i32
  }
}

</mosaic_0001>

<llo_original>
// kernel: tpu_custom_call.1
$region0: #{tpu_custom_call.1}
  #allocation0 [shape = 'u32[]', space=smem, size = 0x4, offset = 0x4, fixed_abs, tag = 'smem constant byte address 0x4 - core index']
  #allocation1 [shape = 'u32[144,128]{1,0:T(1,128)}', space=vmem, size = 0x12000, scoped, tag = 'internal scratch']
  %s0 = inlined_call_operand.hbm [shape: bf16[16,768], index: 0, kind: input, shape index: {}]
  %s1 = inlined_call_operand.hbm [shape: bf16[16,768], index: 1, kind: input, shape index: {}]
  %s2 = inlined_call_operand.hbm [shape: bf16[768,128], index: 2, kind: input, shape index: {}]
  %s3 = inlined_call_operand.hbm [shape: bf16[768,128], index: 3, kind: input, shape index: {}]
  %s4 = inlined_call_operand.vmem [shape: f32[1,128], index: 4, kind: input, shape index: {}]
  %s5 = inlined_call_operand.hbm [shape: bf16[16,128], index: 5, kind: output, shape index: {}]
  %s6 = sld [smem:[#allocation0]]
  $region46: #{tpu_custom_call.1} parent=0
    _
  %s8 = ssub.s32 1, %s6
  %s9 = scalar_select 0, %s8, %s6
  $region1: #{tpu_custom_call.1} parent=0
    #allocation2 [shape = 'u8[24576]{0}', space=vmem, size = 0x6000, scoped, tag = 'input window, operand 0, single buffered']
    #allocation3 [shape = 's32[1]{0}', space=sflag, size = 0x4, scoped, tag = 'scoped memory for tpu_custom_call.1']
    #allocation4 [shape = 's32[1]{0}', space=sflag, size = 0x4, scoped, tag = 'scoped memory for tpu_custom_call.1']
    #allocation5 [shape = 'u8[24576]{0}', space=vmem, size = 0x6000, scoped, tag = 'input window, operand 1, single buffered']
    #allocation6 [shape = 's32[1]{0}', space=sflag, size = 0x4, scoped, tag = 'scoped memory for tpu_custom_call.1']
    #allocation7 [shape = 'u8[196608]{0}', space=vmem, size = 0x30000, scoped, tag = 'input window, operand 2, single buffered']
    #allocation8 [shape = 'u8[196608]{0}', space=vmem, size = 0x30000, scoped, tag = 'input window, operand 3, single buffered']
    #allocation9 [shape = 's32[1]{0}', space=sflag, size = 0x4, scoped, tag = 'scoped memory for tpu_custom_call.1']
    #allocation10 [shape = 'u8[4096]{0}', space=vmem, size = 0x1000, scoped, tag = 'output window, operand 0, single buffered']
    %10 = vsyncpa [#allocation3], 0
    %11 = vsyncpa [#allocation6], 0
    %12 = vsyncpa [#allocation9], 0
    %13 = vsyncpa [#allocation4], 0
    // Predicated region
    $region2: #{tpu_custom_call.1} parent=1 // pred_check
      _
    $region3: #{tpu_custom_call.1} parent=1 // pred_check_branch
      %15 = sbr.rel (0) target = $region5
    $region4: #{tpu_custom_call.1} parent=1 // pred_region
      %s17 = ssub.s32 768, 768
      %18 = vsyncadd [#allocation3], %s17
      %s19 = sshll.u32 [#allocation2], 4
      %s20 = int_to_ptr.vmem [resolvable:$true] %s19
      %25 = dma.hbm_to_vmem [thread:$0]  %s0, 768, %s20, [#allocation3], 384, 384, 24
    $region5: #{tpu_custom_call.1} parent=1 // pred_fallthru
      _
    // Predicated region
    $region6: #{tpu_custom_call.1} parent=1 // pred_check
      _
    $region7: #{tpu_custom_call.1} parent=1 // pred_check_branch
      %27 = sbr.rel (0) target = $region9
    $region8: #{tpu_custom_call.1} parent=1 // pred_region
      %s29 = ssub.s32 768, 768
      %30 = vsyncadd [#allocation6], %s29
      %s31 = sshll.u32 [#allocation5], 4
      %s32 = int_to_ptr.vmem [resolvable:$true] %s31
      %37 = dma.hbm_to_vmem [thread:$0]  %s1, 768, %s32, [#allocation6], 384, 384, 24
    $region9: #{tpu_custom_call.1} parent=1 // pred_fallthru
      _
    // Predicated region
    $region10: #{tpu_custom_call.1} parent=1 // pred_check
      _
    $region11: #{tpu_custom_call.1} parent=1 // pred_check_branch
      %39 = sbr.rel (0) target = $region13
    $region12: #{tpu_custom_call.1} parent=1 // pred_region
      %s41 = ssub.s32 6144, 6144
      %42 = vsyncadd [#allocation6], %s41
      %s43 = sshll.u32 [#allocation7], 4
      %s44 = int_to_ptr.vmem [resolvable:$true] %s43
      %49 = dma.hbm_to_vmem [thread:$0]  %s2, 6144, %s44, [#allocation6], 64, 64, 4
    $region13: #{tpu_custom_call.1} parent=1 // pred_fallthru
      _
    // Predicated region
    $region14: #{tpu_custom_call.1} parent=1 // pred_check
      _
    $region15: #{tpu_custom_call.1} parent=1 // pred_check_branch
      %51 = sbr.rel (0) target = $region17
    $region16: #{tpu_custom_call.1} parent=1 // pred_region
      %s53 = ssub.s32 6144, 6144
      %54 = vsyncadd [#allocation9], %s53
      %s55 = sshll.u32 [#allocation8], 4
      %s56 = int_to_ptr.vmem [resolvable:$true] %s55
      %61 = dma.hbm_to_vmem [thread:$0]  %s3, 6144, %s56, [#allocation9], 64, 64, 4
    $region17: #{tpu_custom_call.1} parent=1 // pred_fallthru
      _
    // Predicated region
    $region18: #{tpu_custom_call.1} parent=1 // pred_check
      _
    $region19: #{tpu_custom_call.1} parent=1 // pred_check_branch
      %63 = sbr.rel (0) target = $region21
    $region20: #{tpu_custom_call.1} parent=1 // pred_region
      _
    $region21: #{tpu_custom_call.1} parent=1 // pred_fallthru
      _
    // Predicated region
    $region22: #{tpu_custom_call.1} parent=1 // pred_check
      _
    $region23: #{tpu_custom_call.1} parent=1 // pred_check_branch
      %65 = sbr.rel (0) target = $region25
    $region24: #{tpu_custom_call.1} parent=1 // pred_region
      %66 = dma.done [#allocation3], 768
    $region25: #{tpu_custom_call.1} parent=1 // pred_fallthru
      _
    // Predicated region
    $region26: #{tpu_custom_call.1} parent=1 // pred_check
      _
    $region27: #{tpu_custom_call.1} parent=1 // pred_check_branch
      %68 = sbr.rel (0) target = $region29
    $region28: #{tpu_custom_call.1} parent=1 // pred_region
      %69 = dma.done [#allocation6], 768
    $region29: #{tpu_custom_call.1} parent=1 // pred_fallthru
      _
    // Predicated region
    $region30: #{tpu_custom_call.1} parent=1 // pred_check
      _
    $region31: #{tpu_custom_call.1} parent=1 // pred_check_branch
      %71 = sbr.rel (0) target = $region33
    $region32: #{tpu_custom_call.1} parent=1 // pred_region
      %72 = dma.done [#allocation6], 6144
    $region33: #{tpu_custom_call.1} parent=1 // pred_fallthru
      _
    // Predicated region
    $region34: #{tpu_custom_call.1} parent=1 // pred_check
      _
    $region35: #{tpu_custom_call.1} parent=1 // pred_check_branch
      %74 = sbr.rel (0) target = $region37
    $region36: #{tpu_custom_call.1} parent=1 // pred_region
      %75 = dma.done [#allocation9], 6144
    $region37: #{tpu_custom_call.1} parent=1 // pred_fallthru
      _
    %v77 = vld [vmem:[#allocation2] sm:$0xff]
    %v78 = vld [vmem:[#allocation2 + $0x8] sm:$0xff]
    %v79 = vld [vmem:[#allocation2 + $0x10] sm:$0xff]
    %v80 = vld [vmem:[#allocation2 + $0x18] sm:$0xff]
    %v81 = vld [vmem:[#allocation2 + $0x20] sm:$0xff]
    %v82 = vld [vmem:[#allocation2 + $0x28] sm:$0xff]
    %v83 = vld [vmem:[#allocation7] sm:$0xf]
    %v84 = vld [vmem:[#allocation7 + $0x4] sm:$0xf]
    %v85 = vld [vmem:[#allocation7 + $0x8] sm:$0xf]
    %v86 = vld [vmem:[#allocation7 + $0xc] sm:$0xf]
    %v87 = vld [vmem:[#allocation7 + $0x10] sm:$0xf]
    %v88 = vld [vmem:[#allocation7 + $0x14] sm:$0xf]
    %v89 = vld [vmem:[#allocation7 + $0x18] sm:$0xf]
    %v90 = vld [vmem:[#allocation7 + $0x1c] sm:$0xf]
    %v91 = vld [vmem:[#allocation7 + $0x20] sm:$0xf]
    %v92 = vld [vmem:[#allocation7 + $0x24] sm:$0xf]
    %v93 = vld [vmem:[#allocation7 + $0x28] sm:$0xf]
    %v94 = vld [vmem:[#allocation7 + $0x2c] sm:$0xf]
    %v95 = vld [vmem:[#allocation7 + $0x30] sm:$0xf]
    %v96 = vld [vmem:[#allocation7 + $0x34] sm:$0xf]
    %v97 = vld [vmem:[#allocation7 + $0x38] sm:$0xf]
    %v98 = vld [vmem:[#allocation7 + $0x3c] sm:$0xf]
    %v99 = vld [vmem:[#allocation7 + $0x40] sm:$0xf]
    %v100 = vld [vmem:[#allocation7 + $0x44] sm:$0xf]
    %v101 = vld [vmem:[#allocation7 + $0x48] sm:$0xf]
    %v102 = vld [vmem:[#allocation7 + $0x4c] sm:$0xf]
    %v103 = vld [vmem:[#allocation7 + $0x50] sm:$0xf]
    %v104 = vld [vmem:[#allocation7 + $0x54] sm:$0xf]
    %v105 = vld [vmem:[#allocation7 + $0x58] sm:$0xf]
    %v106 = vld [vmem:[#allocation7 + $0x5c] sm:$0xf]
    %v107 = vld [vmem:[#allocation7 + $0x60] sm:$0xf]
    %v108 = vld [vmem:[#allocation7 + $0x64] sm:$0xf]
    %v109 = vld [vmem:[#allocation7 + $0x68] sm:$0xf]
    %v110 = vld [vmem:[#allocation7 + $0x6c] sm:$0xf]
    %v111 = vld [vmem:[#allocation7 + $0x70] sm:$0xf]
    %v112 = vld [vmem:[#allocation7 + $0x74] sm:$0xf]
    %v113 = vld [vmem:[#allocation7 + $0x78] sm:$0xf]
    %v114 = vld [vmem:[#allocation7 + $0x7c] sm:$0xf]
    %v115 = vld [vmem:[#allocation7 + $0x80] sm:$0xf]
    %v116 = vld [vmem:[#allocation7 + $0x84] sm:$0xf]
    %v117 = vld [vmem:[#allocation7 + $0x88] sm:$0xf]
    %v118 = vld [vmem:[#allocation7 + $0x8c] sm:$0xf]
    %v119 = vld [vmem:[#allocation7 + $0x90] sm:$0xf]
    %v120 = vld [vmem:[#allocation7 + $0x94] sm:$0xf]
    %v121 = vld [vmem:[#allocation7 + $0x98] sm:$0xf]
    %v122 = vld [vmem:[#allocation7 + $0x9c] sm:$0xf]
    %v123 = vld [vmem:[#allocation7 + $0xa0] sm:$0xf]
    %v124 = vld [vmem:[#allocation7 + $0xa4] sm:$0xf]
    %v125 = vld [vmem:[#allocation7 + $0xa8] sm:$0xf]
    %v126 = vld [vmem:[#allocation7 + $0xac] sm:$0xf]
    %v127 = vld [vmem:[#allocation7 + $0xb0] sm:$0xf]
    %v128 = vld [vmem:[#allocation7 + $0xb4] sm:$0xf]
    %v129 = vld [vmem:[#allocation7 + $0xb8] sm:$0xf]
    %v130 = vld [vmem:[#allocation7 + $0xbc] sm:$0xf]
    %v131 = vld [vmem:[#allocation7 + $0xc0] sm:$0xf]
    %v132 = vld [vmem:[#allocation7 + $0xc4] sm:$0xf]
    %v133 = vld [vmem:[#allocation7 + $0xc8] sm:$0xf]
    %v134 = vld [vmem:[#allocation7 + $0xcc] sm:$0xf]
    %v135 = vld [vmem:[#allocation7 + $0xd0] sm:$0xf]
    %v136 = vld [vmem:[#allocation7 + $0xd4] sm:$0xf]
    %v137 = vld [vmem:[#allocation7 + $0xd8] sm:$0xf]
    %v138 = vld [vmem:[#allocation7 + $0xdc] sm:$0xf]
    %v139 = vld [vmem:[#allocation7 + $0xe0] sm:$0xf]
    %v140 = vld [vmem:[#allocation7 + $0xe4] sm:$0xf]
    %v141 = vld [vmem:[#allocation7 + $0xe8] sm:$0xf]
    %v142 = vld [vmem:[#allocation7 + $0xec] sm:$0xf]
    %v143 = vld [vmem:[#allocation7 + $0xf0] sm:$0xf]
    %v144 = vld [vmem:[#allocation7 + $0xf4] sm:$0xf]
    %v145 = vld [vmem:[#allocation7 + $0xf8] sm:$0xf]
    %v146 = vld [vmem:[#allocation7 + $0xfc] sm:$0xf]
    %v147 = vld [vmem:[#allocation7 + $0x100] sm:$0xf]
    %v148 = vld [vmem:[#allocation7 + $0x104] sm:$0xf]
    %v149 = vld [vmem:[#allocation7 + $0x108] sm:$0xf]
    %v150 = vld [vmem:[#allocation7 + $0x10c] sm:$0xf]
    %v151 = vld [vmem:[#allocation7 + $0x110] sm:$0xf]
    %v152 = vld [vmem:[#allocation7 + $0x114] sm:$0xf]
    %v153 = vld [vmem:[#allocation7 + $0x118] sm:$0xf]
    %v154 = vld [vmem:[#allocation7 + $0x11c] sm:$0xf]
    %v155 = vld [vmem:[#allocation7 + $0x120] sm:$0xf]
    %v156 = vld [vmem:[#allocation7 + $0x124] sm:$0xf]
    %v157 = vld [vmem:[#allocation7 + $0x128] sm:$0xf]
    %v158 = vld [vmem:[#allocation7 + $0x12c] sm:$0xf]
    %v159 = vld [vmem:[#allocation7 + $0x130] sm:$0xf]
    %v160 = vld [vmem:[#allocation7 + $0x134] sm:$0xf]
    %v161 = vld [vmem:[#allocation7 + $0x138] sm:$0xf]
    %v162 = vld [vmem:[#allocation7 + $0x13c] sm:$0xf]
    %v163 = vld [vmem:[#allocation7 + $0x140] sm:$0xf]
    %v164 = vld [vmem:[#allocation7 + $0x144] sm:$0xf]
    %v165 = vld [vmem:[#allocation7 + $0x148] sm:$0xf]
    %v166 = vld [vmem:[#allocation7 + $0x14c] sm:$0xf]
    %v167 = vld [vmem:[#allocation7 + $0x150] sm:$0xf]
    %v168 = vld [vmem:[#allocation7 + $0x154] sm:$0xf]
    %v169 = vld [vmem:[#allocation7 + $0x158] sm:$0xf]
    %v170 = vld [vmem:[#allocation7 + $0x15c] sm:$0xf]
    %v171 = vld [vmem:[#allocation7 + $0x160] sm:$0xf]
    %v172 = vld [vmem:[#allocation7 + $0x164] sm:$0xf]
    %v173 = vld [vmem:[#allocation7 + $0x168] sm:$0xf]
    %v174 = vld [vmem:[#allocation7 + $0x16c] sm:$0xf]
    %v175 = vld [vmem:[#allocation7 + $0x170] sm:$0xf]
    %v176 = vld [vmem:[#allocation7 + $0x174] sm:$0xf]
    %v177 = vld [vmem:[#allocation7 + $0x178] sm:$0xf]
    %v178 = vld [vmem:[#allocation7 + $0x17c] sm:$0xf]
    %v179 = vld [vmem:[#allocation5] sm:$0xff]
    %v180 = vld [vmem:[#allocation5 + $0x8] sm:$0xff]
    %v181 = vld [vmem:[#allocation5 + $0x10] sm:$0xff]
    %v182 = vld [vmem:[#allocation5 + $0x18] sm:$0xff]
    %v183 = vld [vmem:[#allocation5 + $0x20] sm:$0xff]
    %v184 = vld [vmem:[#allocation5 + $0x28] sm:$0xff]
    %v185 = vld [vmem:[#allocation8] sm:$0xf]
    %v186 = vld [vmem:[#allocation8 + $0x4] sm:$0xf]
    %v187 = vld [vmem:[#allocation8 + $0x8] sm:$0xf]
    %v188 = vld [vmem:[#allocation8 + $0xc] sm:$0xf]
    %v189 = vld [vmem:[#allocation8 + $0x10] sm:$0xf]
    %v190 = vld [vmem:[#allocation8 + $0x14] sm:$0xf]
    %v191 = vld [vmem:[#allocation8 + $0x18] sm:$0xf]
    %v192 = vld [vmem:[#allocation8 + $0x1c] sm:$0xf]
    %v193 = vld [vmem:[#allocation8 + $0x20] sm:$0xf]
    %v194 = vld [vmem:[#allocation8 + $0x24] sm:$0xf]
    %v195 = vld [vmem:[#allocation8 + $0x28] sm:$0xf]
    %v196 = vld [vmem:[#allocation8 + $0x2c] sm:$0xf]
    %v197 = vld [vmem:[#allocation8 + $0x30] sm:$0xf]
    %v198 = vld [vmem:[#allocation8 + $0x34] sm:$0xf]
    %v199 = vld [vmem:[#allocation8 + $0x38] sm:$0xf]
    %v200 = vld [vmem:[#allocation8 + $0x3c] sm:$0xf]
    %v201 = vld [vmem:[#allocation8 + $0x40] sm:$0xf]
    %v202 = vld [vmem:[#allocation8 + $0x44] sm:$0xf]
    %v203 = vld [vmem:[#allocation8 + $0x48] sm:$0xf]
    %v204 = vld [vmem:[#allocation8 + $0x4c] sm:$0xf]
    %v205 = vld [vmem:[#allocation8 + $0x50] sm:$0xf]
    %v206 = vld [vmem:[#allocation8 + $0x54] sm:$0xf]
    %v207 = vld [vmem:[#allocation8 + $0x58] sm:$0xf]
    %v208 = vld [vmem:[#allocation8 + $0x5c] sm:$0xf]
    %v209 = vld [vmem:[#allocation8 + $0x60] sm:$0xf]
    %v210 = vld [vmem:[#allocation8 + $0x64] sm:$0xf]
    %v211 = vld [vmem:[#allocation8 + $0x68] sm:$0xf]
    %v212 = vld [vmem:[#allocation8 + $0x6c] sm:$0xf]
    %v213 = vld [vmem:[#allocation8 + $0x70] sm:$0xf]
    %v214 = vld [vmem:[#allocation8 + $0x74] sm:$0xf]
    %v215 = vld [vmem:[#allocation8 + $0x78] sm:$0xf]
    %v216 = vld [vmem:[#allocation8 + $0x7c] sm:$0xf]
    %v217 = vld [vmem:[#allocation8 + $0x80] sm:$0xf]
    %v218 = vld [vmem:[#allocation8 + $0x84] sm:$0xf]
    %v219 = vld [vmem:[#allocation8 + $0x88] sm:$0xf]
    %v220 = vld [vmem:[#allocation8 + $0x8c] sm:$0xf]
    %v221 = vld [vmem:[#allocation8 + $0x90] sm:$0xf]
    %v222 = vld [vmem:[#allocation8 + $0x94] sm:$0xf]
    %v223 = vld [vmem:[#allocation8 + $0x98] sm:$0xf]
    %v224 = vld [vmem:[#allocation8 + $0x9c] sm:$0xf]
    %v225 = vld [vmem:[#allocation8 + $0xa0] sm:$0xf]
    %v226 = vld [vmem:[#allocation8 + $0xa4] sm:$0xf]
    %v227 = vld [vmem:[#allocation8 + $0xa8] sm:$0xf]
    %v228 = vld [vmem:[#allocation8 + $0xac] sm:$0xf]
    %v229 = vld [vmem:[#allocation8 + $0xb0] sm:$0xf]
    %v230 = vld [vmem:[#allocation8 + $0xb4] sm:$0xf]
    %v231 = vld [vmem:[#allocation8 + $0xb8] sm:$0xf]
    %v232 = vld [vmem:[#allocation8 + $0xbc] sm:$0xf]
    %v233 = vld [vmem:[#allocation8 + $0xc0] sm:$0xf]
    %v234 = vld [vmem:[#allocation8 + $0xc4] sm:$0xf]
    %v235 = vld [vmem:[#allocation8 + $0xc8] sm:$0xf]
    %v236 = vld [vmem:[#allocation8 + $0xcc] sm:$0xf]
    %v237 = vld [vmem:[#allocation8 + $0xd0] sm:$0xf]
    %v238 = vld [vmem:[#allocation8 + $0xd4] sm:$0xf]
    %v239 = vld [vmem:[#allocation8 + $0xd8] sm:$0xf]
    %v240 = vld [vmem:[#allocation8 + $0xdc] sm:$0xf]
    %v241 = vld [vmem:[#allocation8 + $0xe0] sm:$0xf]
    %v242 = vld [vmem:[#allocation8 + $0xe4] sm:$0xf]
    %v243 = vld [vmem:[#allocation8 + $0xe8] sm:$0xf]
    %v244 = vld [vmem:[#allocation8 + $0xec] sm:$0xf]
    %v245 = vld [vmem:[#allocation8 + $0xf0] sm:$0xf]
    %v246 = vld [vmem:[#allocation8 + $0xf4] sm:$0xf]
    %v247 = vld [vmem:[#allocation8 + $0xf8] sm:$0xf]
    %v248 = vld [vmem:[#allocation8 + $0xfc] sm:$0xf]
    %v249 = vld [vmem:[#allocation8 + $0x100] sm:$0xf]
    %v250 = vld [vmem:[#allocation8 + $0x104] sm:$0xf]
    %v251 = vld [vmem:[#allocation8 + $0x108] sm:$0xf]
    %v252 = vld [vmem:[#allocation8 + $0x10c] sm:$0xf]
    %v253 = vld [vmem:[#allocation8 + $0x110] sm:$0xf]
    %v254 = vld [vmem:[#allocation8 + $0x114] sm:$0xf]
    %v255 = vld [vmem:[#allocation8 + $0x118] sm:$0xf]
    %v256 = vld [vmem:[#allocation8 + $0x11c] sm:$0xf]
    %v257 = vld [vmem:[#allocation8 + $0x120] sm:$0xf]
    %v258 = vld [vmem:[#allocation8 + $0x124] sm:$0xf]
    %v259 = vld [vmem:[#allocation8 + $0x128] sm:$0xf]
    %v260 = vld [vmem:[#allocation8 + $0x12c] sm:$0xf]
    %v261 = vld [vmem:[#allocation8 + $0x130] sm:$0xf]
    %v262 = vld [vmem:[#allocation8 + $0x134] sm:$0xf]
    %v263 = vld [vmem:[#allocation8 + $0x138] sm:$0xf]
    %v264 = vld [vmem:[#allocation8 + $0x13c] sm:$0xf]
    %v265 = vld [vmem:[#allocation8 + $0x140] sm:$0xf]
    %v266 = vld [vmem:[#allocation8 + $0x144] sm:$0xf]
    %v267 = vld [vmem:[#allocation8 + $0x148] sm:$0xf]
    %v268 = vld [vmem:[#allocation8 + $0x14c] sm:$0xf]
    %v269 = vld [vmem:[#allocation8 + $0x150] sm:$0xf]
    %v270 = vld [vmem:[#allocation8 + $0x154] sm:$0xf]
    %v271 = vld [vmem:[#allocation8 + $0x158] sm:$0xf]
    %v272 = vld [vmem:[#allocation8 + $0x15c] sm:$0xf]
    %v273 = vld [vmem:[#allocation8 + $0x160] sm:$0xf]
    %v274 = vld [vmem:[#allocation8 + $0x164] sm:$0xf]
    %v275 = vld [vmem:[#allocation8 + $0x168] sm:$0xf]
    %v276 = vld [vmem:[#allocation8 + $0x16c] sm:$0xf]
    %v277 = vld [vmem:[#allocation8 + $0x170] sm:$0xf]
    %v278 = vld [vmem:[#allocation8 + $0x174] sm:$0xf]
    %v279 = vld [vmem:[#allocation8 + $0x178] sm:$0xf]
    %v280 = vld [vmem:[#allocation8 + $0x17c] sm:$0xf]
    %v287 = vunpack.c.l.b16 %v179
    %v288 = vunpack.c.h.b16 %v179
    %v289 = vunpack.c.l.b16 %v180
    %v290 = vunpack.c.h.b16 %v180
    %v291 = vunpack.c.l.b16 %v181
    %v292 = vunpack.c.h.b16 %v181
    %v293 = vunpack.c.l.b16 %v182
    %v294 = vunpack.c.h.b16 %v182
    %v295 = vunpack.c.l.b16 %v183
    %v296 = vunpack.c.h.b16 %v183
    %v297 = vunpack.c.l.b16 %v184
    %v298 = vunpack.c.h.b16 %v184
    %v299 = vpack.c.b16 %v293, %v287
    %v300 = vpack.c.b16 %v294, %v288
    %v301 = vpack.c.b16 %v295, %v289
    %v302 = vpack.c.b16 %v296, %v290
    %v303 = vpack.c.b16 %v297, %v291
    %v304 = vpack.c.b16 %v298, %v292
    %v407 = vunpack.c.l.b16 %v185
    %v408 = vunpack.c.l.b16 %v186
    %v409 = vunpack.c.l.b16 %v187
    %v410 = vunpack.c.l.b16 %v188
    %v411 = vunpack.c.l.b16 %v189
    %v412 = vunpack.c.l.b16 %v190
    %v413 = vunpack.c.l.b16 %v191
    %v414 = vunpack.c.l.b16 %v192
    %v415 = vunpack.c.l.b16 %v193
    %v416 = vunpack.c.l.b16 %v194
    %v417 = vunpack.c.l.b16 %v195
    %v418 = vunpack.c.l.b16 %v196
    %v419 = vunpack.c.l.b16 %v197
    %v420 = vunpack.c.l.b16 %v198
    %v421 = vunpack.c.l.b16 %v199
    %v422 = vunpack.c.l.b16 %v200
    %v423 = vunpack.c.l.b16 %v201
    %v424 = vunpack.c.l.b16 %v202
    %v425 = vunpack.c.l.b16 %v203
    %v426 = vunpack.c.l.b16 %v204
    %v427 = vunpack.c.l.b16 %v205
    %v428 = vunpack.c.l.b16 %v206
    %v429 = vunpack.c.l.b16 %v207
    %v430 = vunpack.c.l.b16 %v208
    %v431 = vunpack.c.l.b16 %v209
    %v432 = vunpack.c.l.b16 %v210
    %v433 = vunpack.c.l.b16 %v211
    %v434 = vunpack.c.l.b16 %v212
    %v435 = vunpack.c.l.b16 %v213
    %v436 = vunpack.c.l.b16 %v214
    %v437 = vunpack.c.l.b16 %v215
    %v438 = vunpack.c.l.b16 %v216
    %v439 = vunpack.c.l.b16 %v217
    %v440 = vunpack.c.l.b16 %v218
    %v441 = vunpack.c.l.b16 %v219
    %v442 = vunpack.c.l.b16 %v220
    %v443 = vunpack.c.l.b16 %v221
    %v444 = vunpack.c.l.b16 %v222
    %v445 = vunpack.c.l.b16 %v223
    %v446 = vunpack.c.l.b16 %v224
    %v447 = vunpack.c.l.b16 %v225
    %v448 = vunpack.c.l.b16 %v226
    %v449 = vunpack.c.l.b16 %v227
    %v450 = vunpack.c.l.b16 %v228
    %v451 = vunpack.c.l.b16 %v229
    %v452 = vunpack.c.l.b16 %v230
    %v453 = vunpack.c.l.b16 %v231
    %v454 = vunpack.c.l.b16 %v232
    %v455 = vunpack.c.l.b16 %v233
    %v456 = vunpack.c.l.b16 %v234
    %v457 = vunpack.c.l.b16 %v235
    %v458 = vunpack.c.l.b16 %v236
    %v459 = vunpack.c.l.b16 %v237
    %v460 = vunpack.c.l.b16 %v238
    %v461 = vunpack.c.l.b16 %v239
    %v462 = vunpack.c.l.b16 %v240
    %v463 = vunpack.c.l.b16 %v241
    %v464 = vunpack.c.l.b16 %v242
    %v465 = vunpack.c.l.b16 %v243
    %v466 = vunpack.c.l.b16 %v244
    %v467 = vunpack.c.l.b16 %v245
    %v468 = vunpack.c.l.b16 %v246
    %v469 = vunpack.c.l.b16 %v247
    %v470 = vunpack.c.l.b16 %v248
    %v471 = vunpack.c.l.b16 %v249
    %v472 = vunpack.c.l.b16 %v250
    %v473 = vunpack.c.l.b16 %v251
    %v474 = vunpack.c.l.b16 %v252
    %v475 = vunpack.c.l.b16 %v253
    %v476 = vunpack.c.l.b16 %v254
    %v477 = vunpack.c.l.b16 %v255
    %v478 = vunpack.c.l.b16 %v256
    %v479 = vunpack.c.l.b16 %v257
    %v480 = vunpack.c.l.b16 %v258
    %v481 = vunpack.c.l.b16 %v259
    %v482 = vunpack.c.l.b16 %v260
    %v483 = vunpack.c.l.b16 %v261
    %v484 = vunpack.c.l.b16 %v262
    %v485 = vunpack.c.l.b16 %v263
    %v486 = vunpack.c.l.b16 %v264
    %v487 = vunpack.c.l.b16 %v265
    %v488 = vunpack.c.l.b16 %v266
    %v489 = vunpack.c.l.b16 %v267
    %v490 = vunpack.c.l.b16 %v268
    %v491 = vunpack.c.l.b16 %v269
    %v492 = vunpack.c.l.b16 %v270
    %v493 = vunpack.c.l.b16 %v271
    %v494 = vunpack.c.l.b16 %v272
    %v495 = vunpack.c.l.b16 %v273
    %v496 = vunpack.c.l.b16 %v274
    %v497 = vunpack.c.l.b16 %v275
    %v498 = vunpack.c.l.b16 %v276
    %v499 = vunpack.c.l.b16 %v277
    %v500 = vunpack.c.l.b16 %v278
    %v501 = vunpack.c.l.b16 %v279
    %v502 = vunpack.c.l.b16 %v280
    %v503 = vpack.c.b16 %v408, %v407
    %v504 = vpack.c.b16 %v410, %v409
    %v505 = vpack.c.b16 %v412, %v411
    %v506 = vpack.c.b16 %v414, %v413
    %v507 = vpack.c.b16 %v416, %v415
    %v508 = vpack.c.b16 %v418, %v417
    %v509 = vpack.c.b16 %v420, %v419
    %v510 = vpack.c.b16 %v422, %v421
    %v511 = vpack.c.b16 %v424, %v423
    %v512 = vpack.c.b16 %v426, %v425
    %v513 = vpack.c.b16 %v428, %v427
    %v514 = vpack.c.b16 %v430, %v429
    %v515 = vpack.c.b16 %v432, %v431
    %v516 = vpack.c.b16 %v434, %v433
    %v517 = vpack.c.b16 %v436, %v435
    %v518 = vpack.c.b16 %v438, %v437
    %v519 = vpack.c.b16 %v440, %v439
    %v520 = vpack.c.b16 %v442, %v441
    %v521 = vpack.c.b16 %v444, %v443
    %v522 = vpack.c.b16 %v446, %v445
    %v523 = vpack.c.b16 %v448, %v447
    %v524 = vpack.c.b16 %v450, %v449
    %v525 = vpack.c.b16 %v452, %v451
    %v526 = vpack.c.b16 %v454, %v453
    %v527 = vpack.c.b16 %v456, %v455
    %v528 = vpack.c.b16 %v458, %v457
    %v529 = vpack.c.b16 %v460, %v459
    %v530 = vpack.c.b16 %v462, %v461
    %v531 = vpack.c.b16 %v464, %v463
    %v532 = vpack.c.b16 %v466, %v465
    %v533 = vpack.c.b16 %v468, %v467
    %v534 = vpack.c.b16 %v470, %v469
    %v535 = vpack.c.b16 %v472, %v471
    %v536 = vpack.c.b16 %v474, %v473
    %v537 = vpack.c.b16 %v476, %v475
    %v538 = vpack.c.b16 %v478, %v477
    %v539 = vpack.c.b16 %v480, %v479
    %v540 = vpack.c.b16 %v482, %v481
    %v541 = vpack.c.b16 %v484, %v483
    %v542 = vpack.c.b16 %v486, %v485
    %v543 = vpack.c.b16 %v488, %v487
    %v544 = vpack.c.b16 %v490, %v489
    %v545 = vpack.c.b16 %v492, %v491
    %v546 = vpack.c.b16 %v494, %v493
    %v547 = vpack.c.b16 %v496, %v495
    %v548 = vpack.c.b16 %v498, %v497
    %v549 = vpack.c.b16 %v500, %v499
    %v550 = vpack.c.b16 %v502, %v501
    %599 = vmatprep.subr.bf16.mxu0 0
    %600 = vmatpush1.bf16.msra.mxu0 %v503
    %601 = vmatprep.subr.bf16.mxu0 0
    %602 = vmatpush1.bf16.msra.mxu0 %v504
    %603 = vmatprep.subr.bf16.mxu0 0
    %604 = vmatpush1.bf16.msra.mxu0 %v505
    %605 = vmatprep.subr.bf16.mxu0 0
    %606 = vmatpush1.bf16.msra.mxu0 %v506
    %607 = vmatprep.subr.bf16.mxu0 0
    %608 = vmatpush1.bf16.msra.mxu0 %v507
    %609 = vmatprep.subr.bf16.mxu0 0
    %610 = vmatpush1.bf16.msra.mxu0 %v508
    %611 = vmatprep.subr.bf16.mxu0 0
    %612 = vmatpush1.bf16.msra.mxu0 %v509
    %613 = vmatprep.subr.bf16.mxu0 0
    %614 = vmatpush1.bf16.msra.mxu0 %v510
    %615 = vmatprep.subr.bf16.mxu0 0
    %616 = vmatpush1.bf16.msra.mxu0 %v511
    %617 = vmatprep.subr.bf16.mxu0 0
    %618 = vmatpush1.bf16.msra.mxu0 %v512
    %619 = vmatprep.subr.bf16.mxu0 0
    %620 = vmatpush1.bf16.msra.mxu0 %v513
    %621 = vmatprep.subr.bf16.mxu0 0
    %622 = vmatpush1.bf16.msra.mxu0 %v514
    %623 = vmatprep.subr.bf16.mxu0 0
    %624 = vmatpush1.bf16.msra.mxu0 %v515
    %625 = vmatprep.subr.bf16.mxu0 0
    %626 = vmatpush1.bf16.msra.mxu0 %v516
    %627 = vmatprep.subr.bf16.mxu0 0
    %628 = vmatpush1.bf16.msra.mxu0 %v517
    %629 = vmatprep.subr.bf16.mxu0 0
    %630 = vmatpush1.bf16.msra.mxu0 %v518
    %631 = vmatprep.mubr.bf16.mxu0 %v300
    %632 = vmatmul.mubr.bf16.gmra.mrb[0].mxu0 %v299
    %v633 = vpop.f32.mrb[0].mxu0
    %v634 = vadd.f32 0.0, %v633
    %v635 = vpop.f32.mrb[0].mxu0
    %v636 = vpop.f32.mrb[0].mxu0
    %v637 = vadd.f32 0.0, %v636
    %v638 = vpop.f32.mrb[0].mxu0
    %639 = vdwg.mxu0
    %640 = vmatprep.subr.bf16.mxu0 0
    %641 = vmatpush1.bf16.msra.mxu0 %v519
    %642 = vmatprep.subr.bf16.mxu0 0
    %643 = vmatpush1.bf16.msra.mxu0 %v520
    %644 = vmatprep.subr.bf16.mxu0 0
    %645 = vmatpush1.bf16.msra.mxu0 %v521
    %646 = vmatprep.subr.bf16.mxu0 0
    %647 = vmatpush1.bf16.msra.mxu0 %v522
    %648 = vmatprep.subr.bf16.mxu0 0
    %649 = vmatpush1.bf16.msra.mxu0 %v523
    %650 = vmatprep.subr.bf16.mxu0 0
    %651 = vmatpush1.bf16.msra.mxu0 %v524
    %652 = vmatprep.subr.bf16.mxu0 0
    %653 = vmatpush1.bf16.msra.mxu0 %v525
    %654 = vmatprep.subr.bf16.mxu0 0
    %655 = vmatpush1.bf16.msra.mxu0 %v526
    %656 = vmatprep.subr.bf16.mxu0 0
    %657 = vmatpush1.bf16.msra.mxu0 %v527
    %658 = vmatprep.subr.bf16.mxu0 0
    %659 = vmatpush1.bf16.msra.mxu0 %v528
    %660 = vmatprep.subr.bf16.mxu0 0
    %661 = vmatpush1.bf16.msra.mxu0 %v529
    %662 = vmatprep.subr.bf16.mxu0 0
    %663 = vmatpush1.bf16.msra.mxu0 %v530
    %664 = vmatprep.subr.bf16.mxu0 0
    %665 = vmatpush1.bf16.msra.mxu0 %v531
    %666 = vmatprep.subr.bf16.mxu0 0
    %667 = vmatpush1.bf16.msra.mxu0 %v532
    %668 = vmatprep.subr.bf16.mxu0 0
    %669 = vmatpush1.bf16.msra.mxu0 %v533
    %670 = vmatprep.subr.bf16.mxu0 0
    %671 = vmatpush1.bf16.msra.mxu0 %v534
    %672 = vmatprep.mubr.bf16.mxu0 %v302
    %673 = vmatmul.mubr.bf16.gmra.mrb[0].mxu0 %v301
    %v674 = vpop.f32.mrb[0].mxu0
    %v675 = vadd.f32 %v634, %v674
    %v676 = vpop.f32.mrb[0].mxu0
    %v677 = vpop.f32.mrb[0].mxu0
    %v678 = vadd.f32 %v637, %v677
    %v679 = vpop.f32.mrb[0].mxu0
    %680 = vdwg.mxu0
    %681 = vmatprep.subr.bf16.mxu0 0
    %682 = vmatpush1.bf16.msra.mxu0 %v535
    %683 = vmatprep.subr.bf16.mxu0 0
    %684 = vmatpush1.bf16.msra.mxu0 %v536
    %685 = vmatprep.subr.bf16.mxu0 0
    %686 = vmatpush1.bf16.msra.mxu0 %v537
    %687 = vmatprep.subr.bf16.mxu0 0
    %688 = vmatpush1.bf16.msra.mxu0 %v538
    %689 = vmatprep.subr.bf16.mxu0 0
    %690 = vmatpush1.bf16.msra.mxu0 %v539
    %691 = vmatprep.subr.bf16.mxu0 0
    %692 = vmatpush1.bf16.msra.mxu0 %v540
    %693 = vmatprep.subr.bf16.mxu0 0
    %694 = vmatpush1.bf16.msra.mxu0 %v541
    %695 = vmatprep.subr.bf16.mxu0 0
    %696 = vmatpush1.bf16.msra.mxu0 %v542
    %697 = vmatprep.subr.bf16.mxu0 0
    %698 = vmatpush1.bf16.msra.mxu0 %v543
    %699 = vmatprep.subr.bf16.mxu0 0
    %700 = vmatpush1.bf16.msra.mxu0 %v544
    %701 = vmatprep.subr.bf16.mxu0 0
    %702 = vmatpush1.bf16.msra.mxu0 %v545
    %703 = vmatprep.subr.bf16.mxu0 0
    %704 = vmatpush1.bf16.msra.mxu0 %v546
    %705 = vmatprep.subr.bf16.mxu0 0
    %706 = vmatpush1.bf16.msra.mxu0 %v547
    %707 = vmatprep.subr.bf16.mxu0 0
    %708 = vmatpush1.bf16.msra.mxu0 %v548
    %709 = vmatprep.subr.bf16.mxu0 0
    %710 = vmatpush1.bf16.msra.mxu0 %v549
    %711 = vmatprep.subr.bf16.mxu0 0
    %712 = vmatpush1.bf16.msra.mxu0 %v550
    %713 = vmatprep.mubr.bf16.mxu0 %v304
    %714 = vmatmul.mubr.bf16.gmra.mrb[0].mxu0 %v303
    %v715 = vpop.f32.mrb[0].mxu0
    %v716 = vadd.f32 %v675, %v715
    %v717 = vpop.f32.mrb[0].mxu0
    %v718 = vpop.f32.mrb[0].mxu0
    %v719 = vadd.f32 %v678, %v718
    %v720 = vpop.f32.mrb[0].mxu0
    %721 = vdwg.mxu0
    %v728 = vunpack.c.l.b16 %v77
    %v729 = vunpack.c.h.b16 %v77
    %v730 = vunpack.c.l.b16 %v78
    %v731 = vunpack.c.h.b16 %v78
    %v732 = vunpack.c.l.b16 %v79
    %v733 = vunpack.c.h.b16 %v79
    %v734 = vunpack.c.l.b16 %v80
    %v735 = vunpack.c.h.b16 %v80
    %v736 = vunpack.c.l.b16 %v81
    %v737 = vunpack.c.h.b16 %v81
    %v738 = vunpack.c.l.b16 %v82
    %v739 = vunpack.c.h.b16 %v82
    %v740 = vpack.c.b16 %v734, %v728
    %v741 = vpack.c.b16 %v735, %v729
    %v742 = vpack.c.b16 %v736, %v730
    %v743 = vpack.c.b16 %v737, %v731
    %v744 = vpack.c.b16 %v738, %v732
    %v745 = vpack.c.b16 %v739, %v733
    %v848 = vunpack.c.l.b16 %v83
    %v849 = vunpack.c.l.b16 %v84
    %v850 = vunpack.c.l.b16 %v85
    %v851 = vunpack.c.l.b16 %v86
    %v852 = vunpack.c.l.b16 %v87
    %v853 = vunpack.c.l.b16 %v88
    %v854 = vunpack.c.l.b16 %v89
    %v855 = vunpack.c.l.b16 %v90
    %v856 = vunpack.c.l.b16 %v91
    %v857 = vunpack.c.l.b16 %v92
    %v858 = vunpack.c.l.b16 %v93
    %v859 = vunpack.c.l.b16 %v94
    %v860 = vunpack.c.l.b16 %v95
    %v861 = vunpack.c.l.b16 %v96
    %v862 = vunpack.c.l.b16 %v97
    %v863 = vunpack.c.l.b16 %v98
    %v864 = vunpack.c.l.b16 %v99
    %v865 = vunpack.c.l.b16 %v100
    %v866 = vunpack.c.l.b16 %v101
    %v867 = vunpack.c.l.b16 %v102
    %v868 = vunpack.c.l.b16 %v103
    %v869 = vunpack.c.l.b16 %v104
    %v870 = vunpack.c.l.b16 %v105
    %v871 = vunpack.c.l.b16 %v106
    %v872 = vunpack.c.l.b16 %v107
    %v873 = vunpack.c.l.b16 %v108
    %v874 = vunpack.c.l.b16 %v109
    %v875 = vunpack.c.l.b16 %v110
    %v876 = vunpack.c.l.b16 %v111
    %v877 = vunpack.c.l.b16 %v112
    %v878 = vunpack.c.l.b16 %v113
    %v879 = vunpack.c.l.b16 %v114
    %v880 = vunpack.c.l.b16 %v115
    %v881 = vunpack.c.l.b16 %v116
    %v882 = vunpack.c.l.b16 %v117
    %v883 = vunpack.c.l.b16 %v118
    %v884 = vunpack.c.l.b16 %v119
    %v885 = vunpack.c.l.b16 %v120
    %v886 = vunpack.c.l.b16 %v121
    %v887 = vunpack.c.l.b16 %v122
    %v888 = vunpack.c.l.b16 %v123
    %v889 = vunpack.c.l.b16 %v124
    %v890 = vunpack.c.l.b16 %v125
    %v891 = vunpack.c.l.b16 %v126
    %v892 = vunpack.c.l.b16 %v127
    %v893 = vunpack.c.l.b16 %v128
    %v894 = vunpack.c.l.b16 %v129
    %v895 = vunpack.c.l.b16 %v130
    %v896 = vunpack.c.l.b16 %v131
    %v897 = vunpack.c.l.b16 %v132
    %v898 = vunpack.c.l.b16 %v133
    %v899 = vunpack.c.l.b16 %v134
    %v900 = vunpack.c.l.b16 %v135
    %v901 = vunpack.c.l.b16 %v136
    %v902 = vunpack.c.l.b16 %v137
    %v903 = vunpack.c.l.b16 %v138
    %v904 = vunpack.c.l.b16 %v139
    %v905 = vunpack.c.l.b16 %v140
    %v906 = vunpack.c.l.b16 %v141
    %v907 = vunpack.c.l.b16 %v142
    %v908 = vunpack.c.l.b16 %v143
    %v909 = vunpack.c.l.b16 %v144
    %v910 = vunpack.c.l.b16 %v145
    %v911 = vunpack.c.l.b16 %v146
    %v912 = vunpack.c.l.b16 %v147
    %v913 = vunpack.c.l.b16 %v148
    %v914 = vunpack.c.l.b16 %v149
    %v915 = vunpack.c.l.b16 %v150
    %v916 = vunpack.c.l.b16 %v151
    %v917 = vunpack.c.l.b16 %v152
    %v918 = vunpack.c.l.b16 %v153
    %v919 = vunpack.c.l.b16 %v154
    %v920 = vunpack.c.l.b16 %v155
    %v921 = vunpack.c.l.b16 %v156
    %v922 = vunpack.c.l.b16 %v157
    %v923 = vunpack.c.l.b16 %v158
    %v924 = vunpack.c.l.b16 %v159
    %v925 = vunpack.c.l.b16 %v160
    %v926 = vunpack.c.l.b16 %v161
    %v927 = vunpack.c.l.b16 %v162
    %v928 = vunpack.c.l.b16 %v163
    %v929 = vunpack.c.l.b16 %v164
    %v930 = vunpack.c.l.b16 %v165
    %v931 = vunpack.c.l.b16 %v166
    %v932 = vunpack.c.l.b16 %v167
    %v933 = vunpack.c.l.b16 %v168
    %v934 = vunpack.c.l.b16 %v169
    %v935 = vunpack.c.l.b16 %v170
    %v936 = vunpack.c.l.b16 %v171
    %v937 = vunpack.c.l.b16 %v172
    %v938 = vunpack.c.l.b16 %v173
    %v939 = vunpack.c.l.b16 %v174
    %v940 = vunpack.c.l.b16 %v175
    %v941 = vunpack.c.l.b16 %v176
    %v942 = vunpack.c.l.b16 %v177
    %v943 = vunpack.c.l.b16 %v178
    %v944 = vpack.c.b16 %v849, %v848
    %v945 = vpack.c.b16 %v851, %v850
    %v946 = vpack.c.b16 %v853, %v852
    %v947 = vpack.c.b16 %v855, %v854
    %v948 = vpack.c.b16 %v857, %v856
    %v949 = vpack.c.b16 %v859, %v858
    %v950 = vpack.c.b16 %v861, %v860
    %v951 = vpack.c.b16 %v863, %v862
    %v952 = vpack.c.b16 %v865, %v864
    %v953 = vpack.c.b16 %v867, %v866
    %v954 = vpack.c.b16 %v869, %v868
    %v955 = vpack.c.b16 %v871, %v870
    %v956 = vpack.c.b16 %v873, %v872
    %v957 = vpack.c.b16 %v875, %v874
    %v958 = vpack.c.b16 %v877, %v876
    %v959 = vpack.c.b16 %v879, %v878
    %v960 = vpack.c.b16 %v881, %v880
    %v961 = vpack.c.b16 %v883, %v882
    %v962 = vpack.c.b16 %v885, %v884
    %v963 = vpack.c.b16 %v887, %v886
    %v964 = vpack.c.b16 %v889, %v888
    %v965 = vpack.c.b16 %v891, %v890
    %v966 = vpack.c.b16 %v893, %v892
    %v967 = vpack.c.b16 %v895, %v894
    %v968 = vpack.c.b16 %v897, %v896
    %v969 = vpack.c.b16 %v899, %v898
    %v970 = vpack.c.b16 %v901, %v900
    %v971 = vpack.c.b16 %v903, %v902
    %v972 = vpack.c.b16 %v905, %v904
    %v973 = vpack.c.b16 %v907, %v906
    %v974 = vpack.c.b16 %v909, %v908
    %v975 = vpack.c.b16 %v911, %v910
    %v976 = vpack.c.b16 %v913, %v912
    %v977 = vpack.c.b16 %v915, %v914
    %v978 = vpack.c.b16 %v917, %v916
    %v979 = vpack.c.b16 %v919, %v918
    %v980 = vpack.c.b16 %v921, %v920
    %v981 = vpack.c.b16 %v923, %v922
    %v982 = vpack.c.b16 %v925, %v924
    %v983 = vpack.c.b16 %v927, %v926
    %v984 = vpack.c.b16 %v929, %v928
    %v985 = vpack.c.b16 %v931, %v930
    %v986 = vpack.c.b16 %v933, %v932
    %v987 = vpack.c.b16 %v935, %v934
    %v988 = vpack.c.b16 %v937, %v936
    %v989 = vpack.c.b16 %v939, %v938
    %v990 = vpack.c.b16 %v941, %v940
    %v991 = vpack.c.b16 %v943, %v942
    %1040 = vmatprep.subr.bf16.mxu0 0
    %1041 = vmatpush1.bf16.msra.mxu0 %v944
    %1042 = vmatprep.subr.bf16.mxu0 0
    %1043 = vmatpush1.bf16.msra.mxu0 %v945
    %1044 = vmatprep.subr.bf16.mxu0 0
    %1045 = vmatpush1.bf16.msra.mxu0 %v946
    %1046 = vmatprep.subr.bf16.mxu0 0
    %1047 = vmatpush1.bf16.msra.mxu0 %v947
    %1048 = vmatprep.subr.bf16.mxu0 0
    %1049 = vmatpush1.bf16.msra.mxu0 %v948
    %1050 = vmatprep.subr.bf16.mxu0 0
    %1051 = vmatpush1.bf16.msra.mxu0 %v949
    %1052 = vmatprep.subr.bf16.mxu0 0
    %1053 = vmatpush1.bf16.msra.mxu0 %v950
    %1054 = vmatprep.subr.bf16.mxu0 0
    %1055 = vmatpush1.bf16.msra.mxu0 %v951
    %1056 = vmatprep.subr.bf16.mxu0 0
    %1057 = vmatpush1.bf16.msra.mxu0 %v952
    %1058 = vmatprep.subr.bf16.mxu0 0
    %1059 = vmatpush1.bf16.msra.mxu0 %v953
    %1060 = vmatprep.subr.bf16.mxu0 0
    %1061 = vmatpush1.bf16.msra.mxu0 %v954
    %1062 = vmatprep.subr.bf16.mxu0 0
    %1063 = vmatpush1.bf16.msra.mxu0 %v955
    %1064 = vmatprep.subr.bf16.mxu0 0
    %1065 = vmatpush1.bf16.msra.mxu0 %v956
    %1066 = vmatprep.subr.bf16.mxu0 0
    %1067 = vmatpush1.bf16.msra.mxu0 %v957
    %1068 = vmatprep.subr.bf16.mxu0 0
    %1069 = vmatpush1.bf16.msra.mxu0 %v958
    %1070 = vmatprep.subr.bf16.mxu0 0
    %1071 = vmatpush1.bf16.msra.mxu0 %v959
    %1072 = vmatprep.mubr.bf16.mxu0 %v741
    %1073 = vmatmul.mubr.bf16.gmra.mrb[0].mxu0 %v740
    %v1074 = vpop.f32.mrb[0].mxu0
    %v1075 = vadd.f32 %v716, %v1074
    %v1076 = vpop.f32.mrb[0].mxu0
    %v1077 = vpop.f32.mrb[0].mxu0
    %v1078 = vadd.f32 %v719, %v1077
    %v1079 = vpop.f32.mrb[0].mxu0
    %1080 = vdwg.mxu0
    %1081 = vmatprep.subr.bf16.mxu0 0
    %1082 = vmatpush1.bf16.msra.mxu0 %v960
    %1083 = vmatprep.subr.bf16.mxu0 0
    %1084 = vmatpush1.bf16.msra.mxu0 %v961
    %1085 = vmatprep.subr.bf16.mxu0 0
    %1086 = vmatpush1.bf16.msra.mxu0 %v962
    %1087 = vmatprep.subr.bf16.mxu0 0
    %1088 = vmatpush1.bf16.msra.mxu0 %v963
    %1089 = vmatprep.subr.bf16.mxu0 0
    %1090 = vmatpush1.bf16.msra.mxu0 %v964
    %1091 = vmatprep.subr.bf16.mxu0 0
    %1092 = vmatpush1.bf16.msra.mxu0 %v965
    %1093 = vmatprep.subr.bf16.mxu0 0
    %1094 = vmatpush1.bf16.msra.mxu0 %v966
    %1095 = vmatprep.subr.bf16.mxu0 0
    %1096 = vmatpush1.bf16.msra.mxu0 %v967
    %1097 = vmatprep.subr.bf16.mxu0 0
    %1098 = vmatpush1.bf16.msra.mxu0 %v968
    %1099 = vmatprep.subr.bf16.mxu0 0
    %1100 = vmatpush1.bf16.msra.mxu0 %v969
    %1101 = vmatprep.subr.bf16.mxu0 0
    %1102 = vmatpush1.bf16.msra.mxu0 %v970
    %1103 = vmatprep.subr.bf16.mxu0 0
    %1104 = vmatpush1.bf16.msra.mxu0 %v971
    %1105 = vmatprep.subr.bf16.mxu0 0
    %1106 = vmatpush1.bf16.msra.mxu0 %v972
    %1107 = vmatprep.subr.bf16.mxu0 0
    %1108 = vmatpush1.bf16.msra.mxu0 %v973
    %1109 = vmatprep.subr.bf16.mxu0 0
    %1110 = vmatpush1.bf16.msra.mxu0 %v974
    %1111 = vmatprep.subr.bf16.mxu0 0
    %1112 = vmatpush1.bf16.msra.mxu0 %v975
    %1113 = vmatprep.mubr.bf16.mxu0 %v743
    %1114 = vmatmul.mubr.bf16.gmra.mrb[0].mxu0 %v742
    %v1115 = vpop.f32.mrb[0].mxu0
    %v1116 = vadd.f32 %v1075, %v1115
    %v1117 = vpop.f32.mrb[0].mxu0
    %v1118 = vpop.f32.mrb[0].mxu0
    %v1119 = vadd.f32 %v1078, %v1118
    %v1120 = vpop.f32.mrb[0].mxu0
    %1121 = vdwg.mxu0
    %1122 = vmatprep.subr.bf16.mxu0 0
    %1123 = vmatpush1.bf16.msra.mxu0 %v976
    %1124 = vmatprep.subr.bf16.mxu0 0
    %1125 = vmatpush1.bf16.msra.mxu0 %v977
    %1126 = vmatprep.subr.bf16.mxu0 0
    %1127 = vmatpush1.bf16.msra.mxu0 %v978
    %1128 = vmatprep.subr.bf16.mxu0 0
    %1129 = vmatpush1.bf16.msra.mxu0 %v979
    %1130 = vmatprep.subr.bf16.mxu0 0
    %1131 = vmatpush1.bf16.msra.mxu0 %v980
    %1132 = vmatprep.subr.bf16.mxu0 0
    %1133 = vmatpush1.bf16.msra.mxu0 %v981
    %1134 = vmatprep.subr.bf16.mxu0 0
    %1135 = vmatpush1.bf16.msra.mxu0 %v982
    %1136 = vmatprep.subr.bf16.mxu0 0
    %1137 = vmatpush1.bf16.msra.mxu0 %v983
    %1138 = vmatprep.subr.bf16.mxu0 0
    %1139 = vmatpush1.bf16.msra.mxu0 %v984
    %1140 = vmatprep.subr.bf16.mxu0 0
    %1141 = vmatpush1.bf16.msra.mxu0 %v985
    %1142 = vmatprep.subr.bf16.mxu0 0
    %1143 = vmatpush1.bf16.msra.mxu0 %v986
    %1144 = vmatprep.subr.bf16.mxu0 0
    %1145 = vmatpush1.bf16.msra.mxu0 %v987
    %1146 = vmatprep.subr.bf16.mxu0 0
    %1147 = vmatpush1.bf16.msra.mxu0 %v988
    %1148 = vmatprep.subr.bf16.mxu0 0
    %1149 = vmatpush1.bf16.msra.mxu0 %v989
    %1150 = vmatprep.subr.bf16.mxu0 0
    %1151 = vmatpush1.bf16.msra.mxu0 %v990
    %1152 = vmatprep.subr.bf16.mxu0 0
    %1153 = vmatpush1.bf16.msra.mxu0 %v991
    %1154 = vmatprep.mubr.bf16.mxu0 %v745
    %1155 = vmatmul.mubr.bf16.gmra.mrb[0].mxu0 %v744
    %v1156 = vpop.f32.mrb[0].mxu0
    %v1157 = vadd.f32 %v1116, %v1156
    %v1158 = vpop.f32.mrb[0].mxu0
    %v1159 = vpop.f32.mrb[0].mxu0
    %v1160 = vadd.f32 %v1119, %v1159
    %v1161 = vpop.f32.mrb[0].mxu0
    %1162 = vdwg.mxu0
    %v1163 = vld [vmem:[%s4] sm:$0x1]
    %v1165 = vlaneseq
    %v1166 = vshrl.u32 %v1165, 7
    %v1167 = vsub.s32 0, %v1166
    %v1168 = vrot.slane %v1163, %v1167
    %v1170 = vadd.f32 %v1157, %v1168
    %v1171 = vadd.f32 %v1160, %v1168
    %1172 = vmax.xlane.f32.xlu0 %v1170
    %v1173 = vpop.xlane.xlu0 %1172
    %1174 = vmax.xlane.f32.xlu0 %v1171
    %v1175 = vpop.xlane.xlu0 %1174
    %v1176 = vsub.f32 %v1170, %v1173
    %v1177 = vsub.f32 %v1171, %v1175
    %v1178 = vmul.f32 %v1176, 1.442695
    %v1179 = vpow.pop %v1178
    %v1180 = vmul.f32 %v1177, 1.442695
    %v1181 = vpow.pop %v1180
    %1182 = vadd.xlane.f32.xlu0 %v1179
    %v1183 = vpop.xlane.xlu0 %1182
    %1184 = vadd.xlane.f32.xlu0 %v1181
    %v1185 = vpop.xlane.xlu0 %1184
    %v1186 = vrcp.pop %v1183
    %v1187 = vmul.f32 %v1179, %v1186
    %v1188 = vrcp.pop %v1185
    %v1189 = vmul.f32 %v1181, %v1188
    %v1190 = vpack.c.bf16 %v1189, %v1187
    %v1192 = vunpack.c.l.b16 %v1190
    %v1193 = vunpack.c.h.b16 %v1190
    %v1194 = vpack.c.b16 %v1192, %v1192
    %v1195 = vpack.c.b16 %v1193, %v1193
    %1198 = vst [vmem:[#allocation10] sm:$0xf] %v1194
    %1199 = vst [vmem:[#allocation10 + $0x4] sm:$0xf] %v1195
    // Predicated region
    $region38: #{tpu_custom_call.1} parent=1 // pred_check
      _
    $region39: #{tpu_custom_call.1} parent=1 // pred_check_branch
      %1201 = sbr.rel (0) target = $region41
    $region40: #{tpu_custom_call.1} parent=1 // pred_region
      %s1203 = ssub.s32 128, 128
      %1204 = vsyncadd [#allocation4], %s1203
      %s1205 = sshll.u32 [#allocation10], 4
      %s1206 = int_to_ptr.vmem [resolvable:$true] %s1205
      %1211 = dma.vmem_to_hbm [thread:$0]  %s1206, 128, %s5, [#allocation4], 64, 64, 4
    $region41: #{tpu_custom_call.1} parent=1 // pred_fallthru
      _
    // Predicated region
    $region42: #{tpu_custom_call.1} parent=1 // pred_check
      _
    $region43: #{tpu_custom_call.1} parent=1 // pred_check_branch
      %1213 = sbr.rel (0) target = $region45
    $region44: #{tpu_custom_call.1} parent=1 // pred_region
      %1214 = dma.done [#allocation4], 128
    $region45: #{tpu_custom_call.1} parent=1 // pred_fallthru
      _
    %1215 = vsyncpa [#allocation3], 1
    %1216 = vsyncpa [#allocation6], 1
    %1217 = vsyncpa [#allocation9], 1
    %1218 = vsyncpa [#allocation4], 1

</llo_original>
